<compile_context>
chip_gen: v7x
topology: tpu7x:2x2x1
jax: 0.10.0
libtpu: 0.0.40
codegen_flags: <defaults>
</compile_context>

<pallas_src>
import functools

import jax
import jax.numpy as jnp
from jax.experimental import pallas as pl
from jax.experimental.pallas import tpu as pltpu


def _entity_avg_pool_kernel(x_ref, scale_ref, beta_ref, o_ref, *, num_fields, emb):
    # x_ref:     (tb, F*E)  native dtype (fields concatenated along lanes)
    # scale_ref: (1,  F*E)  float32  (field_weight[f] * gamma, per field slab)
    # beta_ref:  (1,  E)    float32  (beta * sum(field_weights))
    # o_ref:     (tb, E)    output dtype
    inv_e = 1.0 / emb
    acc = None
    for f in range(num_fields):                       # static unrolled loop over fields
        lo, hi = f * emb, (f + 1) * emb
        xf = x_ref[:, lo:hi].astype(jnp.float32)      # static lane slice: free view
        s = jnp.sum(xf, axis=-1, keepdims=True)
        ss = jnp.sum(xf * xf, axis=-1, keepdims=True)
        mean = s * inv_e
        var = ss * inv_e - mean * mean                # E[x^2] - mean^2
        rstd = jax.lax.rsqrt(var + 1e-5)              # LayerNorm eps = 1e-5
        contrib = (xf - mean) * rstd * scale_ref[:, lo:hi]
        acc = contrib if acc is None else acc + contrib
    y = acc + beta_ref[...]                           # beta * sum(w), added once

    # F.normalize(y, dim=1): divide by max(||y||, 1e-12)  ==  y * rsqrt(max(sumsq, 1e-24))
    sumsq = jnp.sum(y * y, axis=-1, keepdims=True)
    o_ref[...] = (y * jax.lax.rsqrt(jnp.maximum(sumsq, 1e-24))).astype(o_ref.dtype)


def _l2_normalize_kernel(x_ref, o_ref):
    # Single-field branch: F.normalize(x, dim=1), no LayerNorm.
    x = x_ref[...].astype(jnp.float32)
    sumsq = jnp.sum(x * x, axis=-1, keepdims=True)
    o_ref[...] = (x * jax.lax.rsqrt(jnp.maximum(sumsq, 1e-24))).astype(o_ref.dtype)


def _choose_tb(batch, max_tb):
    """Largest divisor of `batch` that is a multiple of 8 and <= max_tb,
    preferring >= 2 grid steps (megacore / pipelining)."""
    full = None
    for cand in range(min(max_tb, batch), 7, -1):
        if batch % cand == 0 and cand % 8 == 0:
            if cand < batch:
                return cand
            if full is None:
                full = cand
    return full if full is not None else batch


@functools.partial(jax.jit, static_argnames=("num_fields", "emb", "tb"))
def _entity_avg_pool_call(x_flat, scale_flat, beta_total, *, num_fields, emb, tb):
    batch = x_flat.shape[0]
    kernel = functools.partial(
        _entity_avg_pool_kernel, num_fields=num_fields, emb=emb)
    return pl.pallas_call(
        kernel,
        out_shape=jax.ShapeDtypeStruct((batch, emb), x_flat.dtype),
        grid_spec=pltpu.PrefetchScalarGridSpec(
            num_scalar_prefetch=0,
            grid=(batch // tb,),
            in_specs=[
                pl.BlockSpec((tb, num_fields * emb), lambda i: (i, 0)),
                pl.BlockSpec((1, num_fields * emb), lambda i: (0, 0)),
                pl.BlockSpec((1, emb), lambda i: (0, 0)),
            ],
            out_specs=pl.BlockSpec((tb, emb), lambda i: (i, 0)),
        ),
        compiler_params=pltpu.CompilerParams(
            dimension_semantics=("parallel",)),
    )(x_flat, scale_flat, beta_total)


@functools.partial(jax.jit, static_argnames=("tb",))
def _l2_normalize_call(x, *, tb):
    batch, emb = x.shape
    return pl.pallas_call(
        _l2_normalize_kernel,
        out_shape=jax.ShapeDtypeStruct((batch, emb), x.dtype),
        grid_spec=pltpu.PrefetchScalarGridSpec(
            num_scalar_prefetch=0,
            grid=(batch // tb,),
            in_specs=[pl.BlockSpec((tb, emb), lambda i: (i, 0))],
            out_specs=pl.BlockSpec((tb, emb), lambda i: (i, 0)),
        ),
        compiler_params=pltpu.CompilerParams(
            dimension_semantics=("parallel",)),
    )(x)


def entity_avg_pool_net(field_embeddings, gamma, beta, field_weights=None, *,
                        max_tb=512):
    """field_embeddings: list of F arrays [B, E] (the dict's values). Returns [B, E]."""
    field_embeddings = list(field_embeddings)
    num_fields = len(field_embeddings)
    batch, emb = field_embeddings[0].shape
    tb = _choose_tb(batch, max_tb)

    if field_weights is None or num_fields == 1:
        # PyTorch `else` branch: no LayerNorm, just L2-normalize the single field.
        return _l2_normalize_call(field_embeddings[0], tb=tb)

    # Lane-dense layout: fields along the last dim -> [B, F*E]. Native dtype kept.
    x_flat = jnp.concatenate(field_embeddings, axis=-1)

    w = field_weights.astype(jnp.float32)
    gamma32 = gamma.astype(jnp.float32)
    scale_flat = (w[:, None] * gamma32[None, :]).reshape(1, num_fields * emb)
    beta_total = (beta.astype(jnp.float32) * jnp.sum(w)).reshape(1, emb)

    return _entity_avg_pool_call(
        x_flat, scale_flat, beta_total, num_fields=num_fields, emb=emb, tb=tb)


def _reference_multi(fields, gamma, beta, field_weights):
    x = jnp.stack([f.astype(jnp.float32) for f in fields], axis=1)   # [B, F, E]
    mean = jnp.mean(x, axis=-1, keepdims=True)
    var = jnp.mean((x - mean) ** 2, axis=-1, keepdims=True)
    xn = (x - mean) / jnp.sqrt(var + 1e-5) * gamma + beta
    y = jnp.sum(xn * field_weights[None, :, None], axis=1)
    n = jnp.sqrt(jnp.sum(y * y, axis=-1, keepdims=True))
    return y / jnp.maximum(n, 1e-12)


def _reference_single(x):
    x = x.astype(jnp.float32)
    n = jnp.sqrt(jnp.sum(x * x, axis=-1, keepdims=True))
    return x / jnp.maximum(n, 1e-12)


if __name__ == "__main__":
    # Synthetic setup: 3 fields (len(field_config_dict) == 3), embedding_size = 128.
    B, F_FIELDS, E = 64, 3, 128

    key = jax.random.PRNGKey(0)
    k_fields, k_gamma, k_beta, k_w = jax.random.split(key, 4)
    field_keys = jax.random.split(k_fields, F_FIELDS)

    # field_embedding_dict values -> list of [B, E] arrays (native dtype kept).
    fields = [jax.random.normal(k, (B, E), dtype=jnp.float32) for k in field_keys]

    # Non-trivial (but deterministic) params so the affine/weight folding is exercised.
    gamma = 1.0 + 0.1 * jax.random.normal(k_gamma, (E,), dtype=jnp.float32)
    beta = 0.05 * jax.random.normal(k_beta, (E,), dtype=jnp.float32)
    field_weights = (jnp.full((F_FIELDS,), 1.0 / F_FIELDS, dtype=jnp.float32)
                     + 0.01 * jax.random.normal(k_w, (F_FIELDS,), dtype=jnp.float32))

    # Multi-field branch.
    out = entity_avg_pool_net(fields, gamma, beta, field_weights)
    out = jax.block_until_ready(out)
    ref = _reference_multi(fields, gamma, beta, field_weights)
    assert out.shape == (B, E)
    assert jnp.allclose(out, ref, atol=1e-5, rtol=1e-5), "multi-field mismatch vs reference"

    # Single-field branch (weights is None).
    out1 = entity_avg_pool_net(fields[:1], gamma, beta, None)
    out1 = jax.block_until_ready(out1)
    ref1 = _reference_single(fields[0])
    assert jnp.allclose(out1, ref1, atol=1e-5, rtol=1e-5), "single-field mismatch vs reference"

    print("KERNEL_OK")
</pallas_src>

<mosaic_0001>
module attributes {stable_mosaic.version = 11 : i64} {
  func.func @_entity_avg_pool_kernel(%arg0: i32, %arg1: memref<32x384xf32, #tpu.memory_space<vmem>>, %arg2: memref<1x384xf32, #tpu.memory_space<vmem>>, %arg3: memref<1x128xf32, #tpu.memory_space<vmem>>, %arg4: memref<32x128xf32, #tpu.memory_space<vmem>>) attributes {dimension_semantics = [#tpu.dimension_semantics<parallel>], iteration_bounds = array<i64: 2>, scalar_prefetch = 0 : i64, scratch_operands = 0 : i64, tpu.core_type = #tpu.core_type<tc>, window_params = [{transform_indices = @transform_0, window_bounds = array<i64: 32, 384>}, {pipeline_mode = #tpu.pipeline_mode<synchronous>, transform_indices = @transform_1, window_bounds = array<i64: 1, 384>}, {pipeline_mode = #tpu.pipeline_mode<synchronous>, transform_indices = @transform_2, window_bounds = array<i64: 1, 128>}, {transform_indices = @transform_3, window_bounds = array<i64: 32, 128>}]} {
    %c0 = arith.constant 0 : index
    %c0_0 = arith.constant 0 : index
    %0 = vector.load %arg1[%c0, %c0_0] : memref<32x384xf32, #tpu.memory_space<vmem>>, vector<32x128xf32>
    %cst = arith.constant dense<0.000000e+00> : vector<32xf32>
    %1 = vector.multi_reduction <add>, %0, %cst [1] : vector<32x128xf32> to vector<32xf32>
    %2 = vector.shape_cast %1 : vector<32xf32> to vector<32x1xf32>
    %3 = arith.mulf %0, %0 : vector<32x128xf32>
    %cst_1 = arith.constant dense<0.000000e+00> : vector<32xf32>
    %4 = vector.multi_reduction <add>, %3, %cst_1 [1] : vector<32x128xf32> to vector<32xf32>
    %5 = vector.shape_cast %4 : vector<32xf32> to vector<32x1xf32>
    %cst_2 = arith.constant 7.812500e-03 : f32
    %6 = vector.broadcast %cst_2 : f32 to vector<32x1xf32>
    %7 = arith.mulf %2, %6 : vector<32x1xf32>
    %cst_3 = arith.constant 7.812500e-03 : f32
    %8 = vector.broadcast %cst_3 : f32 to vector<32x1xf32>
    %9 = arith.mulf %5, %8 : vector<32x1xf32>
    %10 = arith.mulf %7, %7 : vector<32x1xf32>
    %11 = arith.subf %9, %10 : vector<32x1xf32>
    %cst_4 = arith.constant 9.99999974E-6 : f32
    %12 = vector.broadcast %cst_4 : f32 to vector<32x1xf32>
    %13 = arith.addf %11, %12 : vector<32x1xf32>
    %14 = math.rsqrt %13 : vector<32x1xf32>
    %15 = vector.broadcast %7 : vector<32x1xf32> to vector<32x128xf32>
    %16 = arith.subf %0, %15 : vector<32x128xf32>
    %17 = vector.broadcast %14 : vector<32x1xf32> to vector<32x128xf32>
    %18 = arith.mulf %16, %17 : vector<32x128xf32>
    %c0_5 = arith.constant 0 : index
    %c0_6 = arith.constant 0 : index
    %19 = vector.load %arg2[%c0_5, %c0_6] : memref<1x384xf32, #tpu.memory_space<vmem>>, vector<1x128xf32>
    %20 = vector.broadcast %19 : vector<1x128xf32> to vector<32x128xf32>
    %21 = arith.mulf %18, %20 : vector<32x128xf32>
    %c0_7 = arith.constant 0 : index
    %c128 = arith.constant 128 : index
    %22 = vector.load %arg1[%c0_7, %c128] : memref<32x384xf32, #tpu.memory_space<vmem>>, vector<32x128xf32>
    %cst_8 = arith.constant dense<0.000000e+00> : vector<32xf32>
    %23 = vector.multi_reduction <add>, %22, %cst_8 [1] : vector<32x128xf32> to vector<32xf32>
    %24 = vector.shape_cast %23 : vector<32xf32> to vector<32x1xf32>
    %25 = arith.mulf %22, %22 : vector<32x128xf32>
    %cst_9 = arith.constant dense<0.000000e+00> : vector<32xf32>
    %26 = vector.multi_reduction <add>, %25, %cst_9 [1] : vector<32x128xf32> to vector<32xf32>
    %27 = vector.shape_cast %26 : vector<32xf32> to vector<32x1xf32>
    %cst_10 = arith.constant 7.812500e-03 : f32
    %28 = vector.broadcast %cst_10 : f32 to vector<32x1xf32>
    %29 = arith.mulf %24, %28 : vector<32x1xf32>
    %cst_11 = arith.constant 7.812500e-03 : f32
    %30 = vector.broadcast %cst_11 : f32 to vector<32x1xf32>
    %31 = arith.mulf %27, %30 : vector<32x1xf32>
    %32 = arith.mulf %29, %29 : vector<32x1xf32>
    %33 = arith.subf %31, %32 : vector<32x1xf32>
    %cst_12 = arith.constant 9.99999974E-6 : f32
    %34 = vector.broadcast %cst_12 : f32 to vector<32x1xf32>
    %35 = arith.addf %33, %34 : vector<32x1xf32>
    %36 = math.rsqrt %35 : vector<32x1xf32>
    %37 = vector.broadcast %29 : vector<32x1xf32> to vector<32x128xf32>
    %38 = arith.subf %22, %37 : vector<32x128xf32>
    %39 = vector.broadcast %36 : vector<32x1xf32> to vector<32x128xf32>
    %40 = arith.mulf %38, %39 : vector<32x128xf32>
    %c0_13 = arith.constant 0 : index
    %c128_14 = arith.constant 128 : index
    %41 = vector.load %arg2[%c0_13, %c128_14] : memref<1x384xf32, #tpu.memory_space<vmem>>, vector<1x128xf32>
    %42 = vector.broadcast %41 : vector<1x128xf32> to vector<32x128xf32>
    %43 = arith.mulf %40, %42 : vector<32x128xf32>
    %44 = arith.addf %21, %43 : vector<32x128xf32>
    %c0_15 = arith.constant 0 : index
    %c256 = arith.constant 256 : index
    %45 = vector.load %arg1[%c0_15, %c256] : memref<32x384xf32, #tpu.memory_space<vmem>>, vector<32x128xf32>
    %cst_16 = arith.constant dense<0.000000e+00> : vector<32xf32>
    %46 = vector.multi_reduction <add>, %45, %cst_16 [1] : vector<32x128xf32> to vector<32xf32>
    %47 = vector.shape_cast %46 : vector<32xf32> to vector<32x1xf32>
    %48 = arith.mulf %45, %45 : vector<32x128xf32>
    %cst_17 = arith.constant dense<0.000000e+00> : vector<32xf32>
    %49 = vector.multi_reduction <add>, %48, %cst_17 [1] : vector<32x128xf32> to vector<32xf32>
    %50 = vector.shape_cast %49 : vector<32xf32> to vector<32x1xf32>
    %cst_18 = arith.constant 7.812500e-03 : f32
    %51 = vector.broadcast %cst_18 : f32 to vector<32x1xf32>
    %52 = arith.mulf %47, %51 : vector<32x1xf32>
    %cst_19 = arith.constant 7.812500e-03 : f32
    %53 = vector.broadcast %cst_19 : f32 to vector<32x1xf32>
    %54 = arith.mulf %50, %53 : vector<32x1xf32>
    %55 = arith.mulf %52, %52 : vector<32x1xf32>
    %56 = arith.subf %54, %55 : vector<32x1xf32>
    %cst_20 = arith.constant 9.99999974E-6 : f32
    %57 = vector.broadcast %cst_20 : f32 to vector<32x1xf32>
    %58 = arith.addf %56, %57 : vector<32x1xf32>
    %59 = math.rsqrt %58 : vector<32x1xf32>
    %60 = vector.broadcast %52 : vector<32x1xf32> to vector<32x128xf32>
    %61 = arith.subf %45, %60 : vector<32x128xf32>
    %62 = vector.broadcast %59 : vector<32x1xf32> to vector<32x128xf32>
    %63 = arith.mulf %61, %62 : vector<32x128xf32>
    %c0_21 = arith.constant 0 : index
    %c256_22 = arith.constant 256 : index
    %64 = vector.load %arg2[%c0_21, %c256_22] : memref<1x384xf32, #tpu.memory_space<vmem>>, vector<1x128xf32>
    %65 = vector.broadcast %64 : vector<1x128xf32> to vector<32x128xf32>
    %66 = arith.mulf %63, %65 : vector<32x128xf32>
    %67 = arith.addf %44, %66 : vector<32x128xf32>
    %c0_23 = arith.constant 0 : index
    %c0_24 = arith.constant 0 : index
    %68 = vector.load %arg3[%c0_23, %c0_24] : memref<1x128xf32, #tpu.memory_space<vmem>>, vector<1x128xf32>
    %69 = vector.broadcast %68 : vector<1x128xf32> to vector<32x128xf32>
    %70 = arith.addf %67, %69 : vector<32x128xf32>
    %71 = arith.mulf %70, %70 : vector<32x128xf32>
    %cst_25 = arith.constant dense<0.000000e+00> : vector<32xf32>
    %72 = vector.multi_reduction <add>, %71, %cst_25 [1] : vector<32x128xf32> to vector<32xf32>
    %73 = vector.shape_cast %72 : vector<32xf32> to vector<32x1xf32>
    %cst_26 = arith.constant 1.000000e-24 : f32
    %74 = vector.broadcast %cst_26 : f32 to vector<32x1xf32>
    %75 = arith.maximumf %73, %74 : vector<32x1xf32>
    %76 = math.rsqrt %75 : vector<32x1xf32>
    %77 = vector.broadcast %76 : vector<32x1xf32> to vector<32x128xf32>
    %78 = arith.mulf %70, %77 : vector<32x128xf32>
    %c0_27 = arith.constant 0 : index
    %c0_28 = arith.constant 0 : index
    %79 = vector.load %arg4[%c0_27, %c0_28] : memref<32x128xf32, #tpu.memory_space<vmem>>, vector<32x128xf32>
    tpu.vector_store %arg4[%c0_27, %c0_28], %78 {strides = array<i32>} : memref<32x128xf32, #tpu.memory_space<vmem>>, vector<32x128xf32>,
    return
  }
  func.func @transform_0(%arg0: i32) -> (i32, i32) {
    %c0_i32 = arith.constant 0 : i32
    %c0_i32_0 = arith.constant 0 : i32
    return %arg0, %c0_i32 : i32, i32
  }
  func.func @transform_1(%arg0: i32) -> (i32, i32) {
    %c0_i32 = arith.constant 0 : i32
    %c0_i32_0 = arith.constant 0 : i32
    %c0_i32_1 = arith.constant 0 : i32
    return %c0_i32, %c0_i32_0 : i32, i32
  }
  func.func @transform_2(%arg0: i32) -> (i32, i32) {
    %c0_i32 = arith.constant 0 : i32
    %c0_i32_0 = arith.constant 0 : i32
    %c0_i32_1 = arith.constant 0 : i32
    return %c0_i32, %c0_i32_0 : i32, i32
  }
  func.func @transform_3(%arg0: i32) -> (i32, i32) {
    %c0_i32 = arith.constant 0 : i32
    %c0_i32_0 = arith.constant 0 : i32
    return %arg0, %c0_i32 : i32, i32
  }
}

</mosaic_0001>

<llo_original>
// kernel: _entity_avg_pool_call.1
$region0: #{_entity_avg_pool_call.1}
  #allocation0 [shape = 'u32[]', space=smem, size = 0x4, offset = 0x4, fixed_abs, tag = 'smem constant byte address 0x4 - core index']
  #allocation1 [shape = 'u32[144,128]{1,0:T(1,128)}', space=vmem, size = 0x12000, scoped, tag = 'internal scratch']
  %s0 = inlined_call_operand.hbm [shape: f32[64,384], index: 0, kind: input, shape index: {}]
  %s1 = inlined_call_operand.vmem [shape: f32[1,384], index: 1, kind: input, shape index: {}]
  %s2 = inlined_call_operand.vmem [shape: f32[1,128], index: 2, kind: input, shape index: {}]
  %s3 = inlined_call_operand.hbm [shape: f32[64,128], index: 3, kind: output, shape index: {}]
  %s4 = sld [smem:[#allocation0]]
  $region49: #{_entity_avg_pool_call.1} parent=0
    _
  %s6 = ssub.s32 1, %s4
  %s7 = scalar_select 0, %s6, %s4
  $region1: #{_entity_avg_pool_call.1} parent=0
    #allocation2 [shape = 'u8[98304]{0}', space=vmem, size = 0x18000, scoped, tag = 'input window, operand 0']
    #allocation3 [shape = 's32[2]{0}', space=sflag, size = 0x8, scoped, tag = 'scoped memory for _entity_avg_pool_call.1']
    #allocation4 [shape = 's32[2]{0}', space=sflag, size = 0x8, scoped, tag = 'scoped memory for _entity_avg_pool_call.1']
    #allocation5 [shape = 'u8[32768]{0}', space=vmem, size = 0x8000, scoped, tag = 'output window, operand 0']
    %8 = vsyncpa [#allocation3], 0
    %s9 = scalar_lea.sflag [#allocation3], 1
    %10 = vsyncpa %s9, 0
    %11 = vsyncpa [#allocation4], 0
    %s12 = scalar_lea.sflag [#allocation4], 1
    %13 = vsyncpa %s12, 0
    loop: start=0, step=1, limit=4
    $region2: #{_entity_avg_pool_call.1} parent=1 // loop_pre_header
      _
    $region3: #{_entity_avg_pool_call.1} parent=1 // loop_header
      %s15 = sphi 0, %s19
      %p16 = scmp.ge.s32.totalorder %s15, 4
      %s25 = sphi 0, %s27
      %s28 = sphi 0, %s25
      %s29 = sphi 0, %s28
      %s45 = sphi 0, %s29
      %s49 = sphi 0, %s49
      %s51 = sphi 0, %s49
      %s52 = sphi 0, %s51
      %s66 = sphi 0, %s52
      %s70 = sphi 0, %s70
      %s72 = sphi 0, %s70
      %s73 = sphi 0, %s72
      %s87 = sphi 0, %s73
      %s93 = sphi 0, %s95
      %s96 = sphi 0, %s93
      %s97 = sphi 0, %s96
      %s113 = sphi 0, %s97
    $region4: #{_entity_avg_pool_call.1} parent=1 // loop_header_branch
      %18 = sbr.rel (%p16) target = $region8
    $region5: #{_entity_avg_pool_call.1} parent=1 // loop_body
      %s20 = ssub.s32 %s15, 1
      %s21 = ssub.s32 %s15, 2
      %s22 = sadd.s32 %s15, 1
      %s23 = ssub.s32 %s15, %s22
      %p24 = scmp.eq.s32.totalorder %s23, 0
      %s26 = sadd.s32 %s25, 1
      %s27 = scalar_select %p24, %s25, %s26
      %p30 = pneg %p24
      %p31 = scmp.eq.s32.totalorder %s15, 1
      %p32 = por %p30, %p31
      %p33 = scmp.ne.s32.totalorder %s25, %s28
      %p34 = scmp.eq.s32.totalorder %s15, 0
      %p35 = por %p33, %p34
      %p36 = scmp.ne.s32.totalorder %s25, %s28
      %p37 = scmp.eq.s32.totalorder %s20, 1
      %p38 = por %p36, %p37
      %p39 = scmp.ne.s32.totalorder %s28, %s29
      %p40 = scmp.eq.s32.totalorder %s20, 0
      %p41 = por %p39, %p40
      %p42 = scmp.ne.s32.totalorder %s28, %s29
      %p43 = scmp.eq.s32.totalorder %s21, 1
      %p44 = por %p42, %p43
      %p46 = scmp.ne.s32.totalorder %s29, %s45
      %p47 = scmp.eq.s32.totalorder %s21, 0
      %p48 = por %p46, %p47
      %s50 = sadd.s32 %s49, 1
      %p53 = scmp.eq.s32.totalorder %s15, 1
      %p54 = scmp.ne.s32.totalorder %s49, %s51
      %p55 = scmp.eq.s32.totalorder %s15, 0
      %p56 = por %p54, %p55
      %p57 = scmp.ne.s32.totalorder %s49, %s51
      %p58 = scmp.eq.s32.totalorder %s20, 1
      %p59 = por %p57, %p58
      %p60 = scmp.ne.s32.totalorder %s51, %s52
      %p61 = scmp.eq.s32.totalorder %s20, 0
      %p62 = por %p60, %p61
      %p63 = scmp.ne.s32.totalorder %s51, %s52
      %p64 = scmp.eq.s32.totalorder %s21, 1
      %p65 = por %p63, %p64
      %p67 = scmp.ne.s32.totalorder %s52, %s66
      %p68 = scmp.eq.s32.totalorder %s21, 0
      %p69 = por %p67, %p68
      %s71 = sadd.s32 %s70, 1
      %p74 = scmp.eq.s32.totalorder %s15, 1
      %p75 = scmp.ne.s32.totalorder %s70, %s72
      %p76 = scmp.eq.s32.totalorder %s15, 0
      %p77 = por %p75, %p76
      %p78 = scmp.ne.s32.totalorder %s70, %s72
      %p79 = scmp.eq.s32.totalorder %s20, 1
      %p80 = por %p78, %p79
      %p81 = scmp.ne.s32.totalorder %s72, %s73
      %p82 = scmp.eq.s32.totalorder %s20, 0
      %p83 = por %p81, %p82
      %p84 = scmp.ne.s32.totalorder %s72, %s73
      %p85 = scmp.eq.s32.totalorder %s21, 1
      %p86 = por %p84, %p85
      %p88 = scmp.ne.s32.totalorder %s73, %s87
      %p89 = scmp.eq.s32.totalorder %s21, 0
      %p90 = por %p88, %p89
      %s91 = ssub.s32 %s15, %s22
      %p92 = scmp.eq.s32.totalorder %s91, 0
      %s94 = sadd.s32 %s93, 1
      %s95 = scalar_select %p92, %s93, %s94
      %p98 = pneg %p92
      %p99 = scmp.eq.s32.totalorder %s15, 1
      %p100 = por %p98, %p99
      %p101 = scmp.ne.s32.totalorder %s93, %s96
      %p102 = scmp.eq.s32.totalorder %s15, 0
      %p103 = por %p101, %p102
      %p104 = scmp.ne.s32.totalorder %s93, %s96
      %p105 = scmp.eq.s32.totalorder %s20, 1
      %p106 = por %p104, %p105
      %p107 = scmp.ne.s32.totalorder %s96, %s97
      %p108 = scmp.eq.s32.totalorder %s20, 0
      %p109 = por %p107, %p108
      %p110 = scmp.ne.s32.totalorder %s96, %s97
      %p111 = scmp.eq.s32.totalorder %s21, 1
      %p112 = por %p110, %p111
      %p114 = scmp.ne.s32.totalorder %s97, %s113
      %p115 = scmp.eq.s32.totalorder %s21, 0
      %p116 = por %p114, %p115
      %p117 = scmp.le.s32.totalorder 1, %s15
      %p118 = scmp.lt.s32.totalorder %s15, 3
      %p119 = pnand %p117, %p118
      %p120 = pneg %p119
      // Predicated region
      $region9: #{_entity_avg_pool_call.1} parent=5 // pred_check
        _
      $region10: #{_entity_avg_pool_call.1} parent=5 // pred_check_branch
        %122 = sbr.rel (%p119) target = $region12
      $region11: #{_entity_avg_pool_call.1} parent=5 // pred_region
        %s123 = ssub.s32 %s15, 1
        // Predicated region
        $region13: #{_entity_avg_pool_call.1} parent=11 // pred_check
          %p124 = pneg %p62
        $region14: #{_entity_avg_pool_call.1} parent=11 // pred_check_branch
          %126 = sbr.rel (%p124) target = $region16
        $region15: #{_entity_avg_pool_call.1} parent=11 // pred_region
          _
        $region16: #{_entity_avg_pool_call.1} parent=11 // pred_fallthru
          _
        // Predicated region
        $region17: #{_entity_avg_pool_call.1} parent=11 // pred_check
          %p127 = pneg %p83
        $region18: #{_entity_avg_pool_call.1} parent=11 // pred_check_branch
          %129 = sbr.rel (%p127) target = $region20
        $region19: #{_entity_avg_pool_call.1} parent=11 // pred_region
          _
        $region20: #{_entity_avg_pool_call.1} parent=11 // pred_fallthru
          _
      $region12: #{_entity_avg_pool_call.1} parent=5 // pred_fallthru
        _
      %p130 = scmp.lt.s32.totalorder %s15, 2
      // Predicated region
      $region21: #{_entity_avg_pool_call.1} parent=5 // pred_check
        %p131 = pneg %p130
      $region22: #{_entity_avg_pool_call.1} parent=5 // pred_check_branch
        %133 = sbr.rel (%p131) target = $region24
      $region23: #{_entity_avg_pool_call.1} parent=5 // pred_region
        // Predicated region
        $region25: #{_entity_avg_pool_call.1} parent=23 // pred_check
          %p134 = pneg %p35
        $region26: #{_entity_avg_pool_call.1} parent=23 // pred_check_branch
          %136 = sbr.rel (%p134) target = $region28
        $region27: #{_entity_avg_pool_call.1} parent=23 // pred_region
          %s137 = sand.u32 %s25, 1
          %s138 = scalar_lea.sflag [#allocation3], %s137
          %s139 = sand.u32 %s25, 1
          %s140 = smul.addr %s139, 96
          %s141 = scalar_lea.vmem [#allocation2], %s140
          %s142 = smul.u32 4, %s15
          %s144 = ssub.s32 1536, 1536
          %145 = vsyncadd %s138, %s144
          %s146 = smul.addr %s142, 3
          %s147 = smul.addr %s146, 128
          %s148 = scalar_lea.hbm %s0, %s147
          %s149 = sshll.u32 %s141, 4
          %s150 = int_to_ptr.vmem [resolvable:$true] %s149
          %155 = dma.hbm_to_vmem [thread:$0]  %s148, 1536, %s150, %s138, 384, 384, 24
        $region28: #{_entity_avg_pool_call.1} parent=23 // pred_fallthru
          _
      $region24: #{_entity_avg_pool_call.1} parent=5 // pred_fallthru
        _
      %p156 = scmp.le.s32.totalorder 1, %s15
      %p157 = scmp.lt.s32.totalorder %s15, 3
      %p158 = pnand %p156, %p157
      %p159 = pneg %p158
      // Predicated region
      $region29: #{_entity_avg_pool_call.1} parent=5 // pred_check
        _
      $region30: #{_entity_avg_pool_call.1} parent=5 // pred_check_branch
        %161 = sbr.rel (%p158) target = $region32
      $region31: #{_entity_avg_pool_call.1} parent=5 // pred_region
        %s162 = ssub.s32 %s15, 1
        %s163 = sand.u32 %s28, 1
        %s164 = scalar_lea.sflag [#allocation3], %s163
        %s165 = sand.u32 %s28, 1
        %s166 = smul.addr %s165, 96
        %s167 = scalar_lea.vmem [#allocation2], %s166
        // Predicated region
        $region33: #{_entity_avg_pool_call.1} parent=31 // pred_check
          %p168 = pneg %p41
        $region34: #{_entity_avg_pool_call.1} parent=31 // pred_check_branch
          %170 = sbr.rel (%p168) target = $region36
        $region35: #{_entity_avg_pool_call.1} parent=31 // pred_region
          %171 = dma.done %s164, 1536
        $region36: #{_entity_avg_pool_call.1} parent=31 // pred_fallthru
          _
        %s172 = sand.u32 %s28, 1
        %s173 = scalar_lea.sflag [#allocation3], %s172
        %s174 = sand.u32 %s28, 1
        %s175 = smul.addr %s174, 96
        %s176 = scalar_lea.vmem [#allocation2], %s175
        %p177 = pneg %p41
        %p178 = pneg %p38
        %p179 = pneg %p62
        %p180 = pneg %p59
        %p181 = pneg %p83
        %p182 = pneg %p80
        %p183 = pneg %p109
        %p184 = pneg %p106
        %s185 = sand.u32 %s96, 1
        %s186 = scalar_lea.sflag [#allocation4], %s185
        %s187 = sand.u32 %s96, 1
        %s188 = smul.addr %s187, 32
        %s189 = scalar_lea.vmem [#allocation5], %s188
        %s190 = smul.u32 4, %s20
        %s191 = smul.u32 4, %s20
        %v192 = vld [vmem:[%s167] sm:$0xff]
        %v193 = vld [vmem:[%s167 + $0x18] sm:$0xff]
        %v194 = vld [vmem:[%s167 + $0x30] sm:$0xff]
        %v195 = vld [vmem:[%s167 + $0x48] sm:$0xff]
        %196 = vadd.xlane.f32.xlu0 %v192
        %v197 = vpop.xlane.xlu0 %196
        %198 = vadd.xlane.f32.xlu0 %v193
        %v199 = vpop.xlane.xlu0 %198
        %200 = vadd.xlane.f32.xlu0 %v194
        %v201 = vpop.xlane.xlu0 %200
        %202 = vadd.xlane.f32.xlu0 %v195
        %v203 = vpop.xlane.xlu0 %202
        %v204 = vmul.f32 %v192, %v192
        %v205 = vmul.f32 %v193, %v193
        %v206 = vmul.f32 %v194, %v194
        %v207 = vmul.f32 %v195, %v195
        %208 = vadd.xlane.f32.xlu0 %v204
        %v209 = vpop.xlane.xlu0 %208
        %210 = vadd.xlane.f32.xlu0 %v205
        %v211 = vpop.xlane.xlu0 %210
        %212 = vadd.xlane.f32.xlu0 %v206
        %v213 = vpop.xlane.xlu0 %212
        %214 = vadd.xlane.f32.xlu0 %v207
        %v215 = vpop.xlane.xlu0 %214
        %v216 = vmul.f32 %v197, 0.0078125
        %v217 = vmul.f32 %v199, 0.0078125
        %v218 = vmul.f32 %v201, 0.0078125
        %v219 = vmul.f32 %v203, 0.0078125
        %v220 = vmul.f32 %v209, 0.0078125
        %v221 = vmul.f32 %v211, 0.0078125
        %v222 = vmul.f32 %v213, 0.0078125
        %v223 = vmul.f32 %v215, 0.0078125
        %v224 = vmul.f32 %v216, %v216
        %v225 = vmul.f32 %v217, %v217
        %v226 = vmul.f32 %v218, %v218
        %v227 = vmul.f32 %v219, %v219
        %v228 = vsub.f32 %v220, %v224
        %v229 = vsub.f32 %v221, %v225
        %v230 = vsub.f32 %v222, %v226
        %v231 = vsub.f32 %v223, %v227
        %v232 = vadd.f32 %v228, 1e-05
        %v233 = vadd.f32 %v229, 1e-05
        %v234 = vadd.f32 %v230, 1e-05
        %v235 = vadd.f32 %v231, 1e-05
        %v236 = vrsqrt.pop %v232
        %v237 = vrsqrt.pop %v233
        %v238 = vrsqrt.pop %v234
        %v239 = vrsqrt.pop %v235
        %v240 = vsub.f32 %v192, %v216
        %v241 = vsub.f32 %v193, %v217
        %v242 = vsub.f32 %v194, %v218
        %v243 = vsub.f32 %v195, %v219
        %v244 = vmul.f32 %v240, %v236
        %v245 = vmul.f32 %v241, %v237
        %v246 = vmul.f32 %v242, %v238
        %v247 = vmul.f32 %v243, %v239
        %v248 = vld [vmem:[%s1] sm:$0x1]
        %v250 = vlaneseq
        %v251 = vshrl.u32 %v250, 7
        %v252 = vsub.s32 0, %v251
        %v253 = vrot.slane %v248, %v252
        %v255 = vmul.f32 %v244, %v253
        %v256 = vmul.f32 %v245, %v253
        %v257 = vmul.f32 %v246, %v253
        %v258 = vmul.f32 %v247, %v253
        %v259 = vld [vmem:[%s167 + $0x8] sm:$0xff]
        %v260 = vld [vmem:[%s167 + $0x20] sm:$0xff]
        %v261 = vld [vmem:[%s167 + $0x38] sm:$0xff]
        %v262 = vld [vmem:[%s167 + $0x50] sm:$0xff]
        %263 = vadd.xlane.f32.xlu0 %v259
        %v264 = vpop.xlane.xlu0 %263
        %265 = vadd.xlane.f32.xlu0 %v260
        %v266 = vpop.xlane.xlu0 %265
        %267 = vadd.xlane.f32.xlu0 %v261
        %v268 = vpop.xlane.xlu0 %267
        %269 = vadd.xlane.f32.xlu0 %v262
        %v270 = vpop.xlane.xlu0 %269
        %v271 = vmul.f32 %v259, %v259
        %v272 = vmul.f32 %v260, %v260
        %v273 = vmul.f32 %v261, %v261
        %v274 = vmul.f32 %v262, %v262
        %275 = vadd.xlane.f32.xlu0 %v271
        %v276 = vpop.xlane.xlu0 %275
        %277 = vadd.xlane.f32.xlu0 %v272
        %v278 = vpop.xlane.xlu0 %277
        %279 = vadd.xlane.f32.xlu0 %v273
        %v280 = vpop.xlane.xlu0 %279
        %281 = vadd.xlane.f32.xlu0 %v274
        %v282 = vpop.xlane.xlu0 %281
        %v283 = vmul.f32 %v264, 0.0078125
        %v284 = vmul.f32 %v266, 0.0078125
        %v285 = vmul.f32 %v268, 0.0078125
        %v286 = vmul.f32 %v270, 0.0078125
        %v287 = vmul.f32 %v276, 0.0078125
        %v288 = vmul.f32 %v278, 0.0078125
        %v289 = vmul.f32 %v280, 0.0078125
        %v290 = vmul.f32 %v282, 0.0078125
        %v291 = vmul.f32 %v283, %v283
        %v292 = vmul.f32 %v284, %v284
        %v293 = vmul.f32 %v285, %v285
        %v294 = vmul.f32 %v286, %v286
        %v295 = vsub.f32 %v287, %v291
        %v296 = vsub.f32 %v288, %v292
        %v297 = vsub.f32 %v289, %v293
        %v298 = vsub.f32 %v290, %v294
        %v299 = vadd.f32 %v295, 1e-05
        %v300 = vadd.f32 %v296, 1e-05
        %v301 = vadd.f32 %v297, 1e-05
        %v302 = vadd.f32 %v298, 1e-05
        %v303 = vrsqrt.pop %v299
        %v304 = vrsqrt.pop %v300
        %v305 = vrsqrt.pop %v301
        %v306 = vrsqrt.pop %v302
        %v307 = vsub.f32 %v259, %v283
        %v308 = vsub.f32 %v260, %v284
        %v309 = vsub.f32 %v261, %v285
        %v310 = vsub.f32 %v262, %v286
        %v311 = vmul.f32 %v307, %v303
        %v312 = vmul.f32 %v308, %v304
        %v313 = vmul.f32 %v309, %v305
        %v314 = vmul.f32 %v310, %v306
        %v315 = vld [vmem:[%s1 + $0x1] sm:$0x1]
        %v317 = vlaneseq
        %v318 = vshrl.u32 %v317, 7
        %v319 = vsub.s32 0, %v318
        %v320 = vrot.slane %v315, %v319
        %v322 = vmul.f32 %v311, %v320
        %v323 = vmul.f32 %v312, %v320
        %v324 = vmul.f32 %v313, %v320
        %v325 = vmul.f32 %v314, %v320
        %v326 = vadd.f32 %v255, %v322
        %v327 = vadd.f32 %v256, %v323
        %v328 = vadd.f32 %v257, %v324
        %v329 = vadd.f32 %v258, %v325
        %v330 = vld [vmem:[%s167 + $0x10] sm:$0xff]
        %v331 = vld [vmem:[%s167 + $0x28] sm:$0xff]
        %v332 = vld [vmem:[%s167 + $0x40] sm:$0xff]
        %v333 = vld [vmem:[%s167 + $0x58] sm:$0xff]
        %334 = vadd.xlane.f32.xlu0 %v330
        %v335 = vpop.xlane.xlu0 %334
        %336 = vadd.xlane.f32.xlu0 %v331
        %v337 = vpop.xlane.xlu0 %336
        %338 = vadd.xlane.f32.xlu0 %v332
        %v339 = vpop.xlane.xlu0 %338
        %340 = vadd.xlane.f32.xlu0 %v333
        %v341 = vpop.xlane.xlu0 %340
        %v342 = vmul.f32 %v330, %v330
        %v343 = vmul.f32 %v331, %v331
        %v344 = vmul.f32 %v332, %v332
        %v345 = vmul.f32 %v333, %v333
        %346 = vadd.xlane.f32.xlu0 %v342
        %v347 = vpop.xlane.xlu0 %346
        %348 = vadd.xlane.f32.xlu0 %v343
        %v349 = vpop.xlane.xlu0 %348
        %350 = vadd.xlane.f32.xlu0 %v344
        %v351 = vpop.xlane.xlu0 %350
        %352 = vadd.xlane.f32.xlu0 %v345
        %v353 = vpop.xlane.xlu0 %352
        %v354 = vmul.f32 %v335, 0.0078125
        %v355 = vmul.f32 %v337, 0.0078125
        %v356 = vmul.f32 %v339, 0.0078125
        %v357 = vmul.f32 %v341, 0.0078125
        %v358 = vmul.f32 %v347, 0.0078125
        %v359 = vmul.f32 %v349, 0.0078125
        %v360 = vmul.f32 %v351, 0.0078125
        %v361 = vmul.f32 %v353, 0.0078125
        %v362 = vmul.f32 %v354, %v354
        %v363 = vmul.f32 %v355, %v355
        %v364 = vmul.f32 %v356, %v356
        %v365 = vmul.f32 %v357, %v357
        %v366 = vsub.f32 %v358, %v362
        %v367 = vsub.f32 %v359, %v363
        %v368 = vsub.f32 %v360, %v364
        %v369 = vsub.f32 %v361, %v365
        %v370 = vadd.f32 %v366, 1e-05
        %v371 = vadd.f32 %v367, 1e-05
        %v372 = vadd.f32 %v368, 1e-05
        %v373 = vadd.f32 %v369, 1e-05
        %v374 = vrsqrt.pop %v370
        %v375 = vrsqrt.pop %v371
        %v376 = vrsqrt.pop %v372
        %v377 = vrsqrt.pop %v373
        %v378 = vsub.f32 %v330, %v354
        %v379 = vsub.f32 %v331, %v355
        %v380 = vsub.f32 %v332, %v356
        %v381 = vsub.f32 %v333, %v357
        %v382 = vmul.f32 %v378, %v374
        %v383 = vmul.f32 %v379, %v375
        %v384 = vmul.f32 %v380, %v376
        %v385 = vmul.f32 %v381, %v377
        %v386 = vld [vmem:[%s1 + $0x2] sm:$0x1]
        %v388 = vlaneseq
        %v389 = vshrl.u32 %v388, 7
        %v390 = vsub.s32 0, %v389
        %v391 = vrot.slane %v386, %v390
        %v393 = vmul.f32 %v382, %v391
        %v394 = vmul.f32 %v383, %v391
        %v395 = vmul.f32 %v384, %v391
        %v396 = vmul.f32 %v385, %v391
        %v397 = vadd.f32 %v326, %v393
        %v398 = vadd.f32 %v327, %v394
        %v399 = vadd.f32 %v328, %v395
        %v400 = vadd.f32 %v329, %v396
        %v401 = vld [vmem:[%s2] sm:$0x1]
        %v403 = vlaneseq
        %v404 = vshrl.u32 %v403, 7
        %v405 = vsub.s32 0, %v404
        %v406 = vrot.slane %v401, %v405
        %v408 = vadd.f32 %v397, %v406
        %v409 = vadd.f32 %v398, %v406
        %v410 = vadd.f32 %v399, %v406
        %v411 = vadd.f32 %v400, %v406
        %v412 = vmul.f32 %v408, %v408
        %v413 = vmul.f32 %v409, %v409
        %v414 = vmul.f32 %v410, %v410
        %v415 = vmul.f32 %v411, %v411
        %416 = vadd.xlane.f32.xlu0 %v412
        %v417 = vpop.xlane.xlu0 %416
        %418 = vadd.xlane.f32.xlu0 %v413
        %v419 = vpop.xlane.xlu0 %418
        %420 = vadd.xlane.f32.xlu0 %v414
        %v421 = vpop.xlane.xlu0 %420
        %422 = vadd.xlane.f32.xlu0 %v415
        %v423 = vpop.xlane.xlu0 %422
        %v424 = vmax.f32 %v417, 1e-24
        %v425 = vmax.f32 %v419, 1e-24
        %v426 = vmax.f32 %v421, 1e-24
        %v427 = vmax.f32 %v423, 1e-24
        %v428 = vrsqrt.pop %v424
        %v429 = vrsqrt.pop %v425
        %v430 = vrsqrt.pop %v426
        %v431 = vrsqrt.pop %v427
        %v432 = vmul.f32 %v408, %v428
        %v433 = vmul.f32 %v409, %v429
        %v434 = vmul.f32 %v410, %v430
        %v435 = vmul.f32 %v411, %v431
        %436 = vst [vmem:[%s189] sm:$0xff] %v432
        %437 = vst [vmem:[%s189 + $0x8] sm:$0xff] %v433
        %438 = vst [vmem:[%s189 + $0x10] sm:$0xff] %v434
        %439 = vst [vmem:[%s189 + $0x18] sm:$0xff] %v435
        %s440 = sand.u32 %s96, 1
        %s441 = scalar_lea.sflag [#allocation4], %s440
        %s442 = sand.u32 %s96, 1
        %s443 = smul.addr %s442, 32
        %s444 = scalar_lea.vmem [#allocation5], %s443
        // Predicated region
        $region37: #{_entity_avg_pool_call.1} parent=31 // pred_check
          %p445 = pneg %p106
        $region38: #{_entity_avg_pool_call.1} parent=31 // pred_check_branch
          %447 = sbr.rel (%p445) target = $region40
        $region39: #{_entity_avg_pool_call.1} parent=31 // pred_region
          %s448 = smul.u32 4, %s20
          %s450 = ssub.s32 512, 512
          %451 = vsyncadd %s441, %s450
          %s452 = smul.addr %s448, 128
          %s453 = scalar_lea.hbm %s3, %s452
          %s454 = sshll.u32 %s444, 4
          %s455 = int_to_ptr.vmem [resolvable:$true] %s454
          %460 = dma.vmem_to_hbm [thread:$0]  %s455, 512, %s453, %s441, 128, 128, 8
        $region40: #{_entity_avg_pool_call.1} parent=31 // pred_fallthru
          _
      $region32: #{_entity_avg_pool_call.1} parent=5 // pred_fallthru
        _
      %p461 = scmp.le.s32.totalorder 2, %s15
      // Predicated region
      $region41: #{_entity_avg_pool_call.1} parent=5 // pred_check
        %p462 = pneg %p461
      $region42: #{_entity_avg_pool_call.1} parent=5 // pred_check_branch
        %464 = sbr.rel (%p462) target = $region44
      $region43: #{_entity_avg_pool_call.1} parent=5 // pred_region
        %s465 = ssub.s32 %s15, 2
        // Predicated region
        $region45: #{_entity_avg_pool_call.1} parent=43 // pred_check
          %p466 = pneg %p112
        $region46: #{_entity_avg_pool_call.1} parent=43 // pred_check_branch
          %468 = sbr.rel (%p466) target = $region48
        $region47: #{_entity_avg_pool_call.1} parent=43 // pred_region
          %s469 = sand.u32 %s97, 1
          %s470 = scalar_lea.sflag [#allocation4], %s469
          %s471 = sand.u32 %s97, 1
          %s472 = smul.addr %s471, 32
          %s473 = scalar_lea.vmem [#allocation5], %s472
          %474 = dma.done %s470, 512
        $region48: #{_entity_avg_pool_call.1} parent=43 // pred_fallthru
          _
      $region44: #{_entity_avg_pool_call.1} parent=5 // pred_fallthru
        _
    $region6: #{_entity_avg_pool_call.1} parent=1 // loop_footer
      %s19 = sadd.s32 1, %s15
    $region7: #{_entity_avg_pool_call.1} parent=1 // loop_footer_branch
      %14 = sbr.rel target = $region3
    $region8: #{_entity_avg_pool_call.1} parent=1 // loop_exit
      _
    %475 = vsyncpa [#allocation3], 1
    %s476 = scalar_lea.sflag [#allocation3], 1
    %477 = vsyncpa %s476, 1
    %478 = vsyncpa [#allocation4], 1
    %s479 = scalar_lea.sflag [#allocation4], 1
    %480 = vsyncpa %s479, 1

</llo_original>
